<compile_context>
chip_gen: v6e
topology: v6e:2x2x1
jax: 0.10.0
libtpu: 0.0.40
codegen_flags: <defaults>
</compile_context>

<pallas_src>
import jax
import jax.numpy as jnp
from jax.experimental import pallas as pl
from jax.experimental.pallas import tpu as pltpu


def _round_up(x, m):
    return (x + m - 1) // m * m


def _mlp_kernel(x_ref, w1_ref, b1_ref, w2_ref, b2_ref, w3_ref, b3_ref, o_ref):
    # x streamed as f32 from HBM, cast to bf16 for the MXU (f32 accumulate).
    x = x_ref[...].astype(jnp.bfloat16)
    # fc1 + relu
    h1 = jnp.dot(x, w1_ref[...], preferred_element_type=jnp.float32)
    h1 = jnp.maximum(h1 + b1_ref[...], 0.0)
    # fc2 + relu
    h2 = jnp.dot(h1.astype(jnp.bfloat16), w2_ref[...],
                 preferred_element_type=jnp.float32)
    h2 = jnp.maximum(h2 + b2_ref[...], 0.0)
    # fc3 (no activation); N = n_out unpadded
    out = jnp.dot(h2.astype(jnp.bfloat16), w3_ref[...],
                  preferred_element_type=jnp.float32)
    o_ref[...] = (out + b3_ref[...]).astype(o_ref.dtype)


def prepare_params(params):
    """One-time conversion to MXU-friendly layout.

    Weights are stored (in_features, out_features) = transpose of PyTorch's
    nn.Linear weight. Hidden dims are zero-padded (50->64, 200->256); the
    output dim of fc3 is left unpadded. Pad entries are exactly zero, so the
    padded hidden units stay zero through bias+ReLU and never contribute.
    """
    w1, b1, w2, b2, w3, b3 = params
    n_in, h1 = w1.shape
    h2 = w2.shape[1]
    n_out = w3.shape[1]
    h1_p = _round_up(h1, 64)     # 50  -> 64
    h2_p = _round_up(h2, 128)    # 200 -> 256

    def pad2(a, rows, cols, dtype):
        buf = jnp.zeros((rows, cols), dtype)
        return buf.at[: a.shape[0], : a.shape[1]].set(a.astype(dtype))

    return (
        pad2(w1, n_in, h1_p, jnp.bfloat16),
        pad2(b1, 1, h1_p, jnp.float32),
        pad2(w2, h1_p, h2_p, jnp.bfloat16),
        pad2(b2, 1, h2_p, jnp.float32),
        pad2(w3, h2_p, n_out, jnp.bfloat16),   # n_out left unpadded
        pad2(b3, 1, n_out, jnp.float32),
    )


def mlp_forward(x, padded_params, *, tb=512):
    """Fused MLP forward. x: (B, n_input) f32 (unpadded). Returns (B, n_output) f32."""
    w1, b1, w2, b2, w3, b3 = padded_params
    B, n_in = x.shape
    h1_p = w1.shape[1]
    h2_p = w2.shape[1]
    n_out = w3.shape[1]

    # Batch tile: large (amortize per-step overhead, long DMAs), but split so
    # a 2-TC chip (v7x) gets at least 2 grid steps when B allows. Multiple of 8.
    TB = max(8, min(tb, _round_up(pl.cdiv(B, 2), 8)))
    grid = (pl.cdiv(B, TB),)   # ragged tail handled by Pallas read-pad / write-clip

    out = pl.pallas_call(
        _mlp_kernel,
        out_shape=jax.ShapeDtypeStruct((B, n_out), jnp.float32),
        grid=grid,
        in_specs=[
            pl.BlockSpec((TB, n_in), lambda i: (i, 0)),       # x tile (unpadded)
            pl.BlockSpec((n_in, h1_p), lambda i: (0, 0)),     # w1 resident
            pl.BlockSpec((1, h1_p), lambda i: (0, 0)),        # b1 resident
            pl.BlockSpec((h1_p, h2_p), lambda i: (0, 0)),     # w2 resident
            pl.BlockSpec((1, h2_p), lambda i: (0, 0)),        # b2 resident
            pl.BlockSpec((h2_p, n_out), lambda i: (0, 0)),    # w3 resident (N unpadded)
            pl.BlockSpec((1, n_out), lambda i: (0, 0)),       # b3 resident
        ],
        out_specs=pl.BlockSpec((TB, n_out), lambda i: (i, 0)),
        compiler_params=pltpu.CompilerParams(
            dimension_semantics=("parallel",),
        ),
    )(x, w1, b1, w2, b2, w3, b3)

    return out


def init_params(key, n_input, n_output):
    """Deterministic init mimicking nn.Linear default (uniform +/- 1/sqrt(fan_in))."""
    dims = [(n_input, 50), (50, 200), (200, n_output)]
    params = []
    for (fan_in, fan_out) in dims:
        key, kw, kb = jax.random.split(key, 3)
        bound = 1.0 / jnp.sqrt(jnp.asarray(fan_in, jnp.float32))
        # stored as (in, out) = transpose of PyTorch's (out, in) weight
        w = jax.random.uniform(kw, (fan_in, fan_out), jnp.float32, -bound, bound)
        b = jax.random.uniform(kb, (1, fan_out), jnp.float32, -bound, bound)
        params += [w, b]
    return tuple(params)


def reference_forward(x, params):
    """Pure-JAX reference using the same bf16-operand / f32-accumulate path."""
    w1, b1, w2, b2, w3, b3 = params

    def d(a, b):
        return jnp.dot(a.astype(jnp.bfloat16), b.astype(jnp.bfloat16),
                       preferred_element_type=jnp.float32)

    h1 = jnp.maximum(d(x, w1) + b1, 0.0)
    h2 = jnp.maximum(d(h1, w2) + b2, 0.0)
    return d(h2, w3) + b3


if __name__ == "__main__":
    n_input, n_output = 32, 8

    key = jax.random.PRNGKey(0)
    key, kx1, kx2 = jax.random.split(key, 3)
    params = init_params(key, n_input, n_output)
    padded_params = prepare_params(params)   # one-time weight prep

    # Case 1: tiny batch (single grid step, TB = 8).
    x_small = jax.random.normal(kx1, (8, n_input), jnp.float32)
    out_small = jax.block_until_ready(mlp_forward(x_small, padded_params))
    ref_small = reference_forward(x_small, params)
    assert out_small.shape == (8, n_output)
    assert jnp.allclose(out_small, ref_small, atol=1e-2, rtol=1e-2), \
        "mismatch vs reference (small batch)"

    # Case 2: non-tile-multiple batch -> 2-step parallel grid (TB=104):
    # exercises the ragged-tail write clipping and both-TC sharding on v7x.
    x_big = jax.random.normal(kx2, (200, n_input), jnp.float32)
    out_big = jax.block_until_ready(mlp_forward(x_big, padded_params))
    ref_big = reference_forward(x_big, params)
    assert out_big.shape == (200, n_output)
    assert jnp.allclose(out_big, ref_big, atol=1e-2, rtol=1e-2), \
        "mismatch vs reference (gridded batch)"

    print("KERNEL_OK")
</pallas_src>

<mosaic_0001>
module attributes {stable_mosaic.version = 11 : i64} {
  func.func @_mlp_kernel(%arg0: i32, %arg1: memref<8x32xf32, #tpu.memory_space<vmem>>, %arg2: memref<32x64xbf16, #tpu.memory_space<vmem>>, %arg3: memref<1x64xf32, #tpu.memory_space<vmem>>, %arg4: memref<64x256xbf16, #tpu.memory_space<vmem>>, %arg5: memref<1x256xf32, #tpu.memory_space<vmem>>, %arg6: memref<256x8xbf16, #tpu.memory_space<vmem>>, %arg7: memref<1x8xf32, #tpu.memory_space<vmem>>, %arg8: memref<8x8xf32, #tpu.memory_space<vmem>>) attributes {dimension_semantics = [#tpu.dimension_semantics<parallel>], iteration_bounds = array<i64: 1>, scalar_prefetch = 0 : i64, scratch_operands = 0 : i64, tpu.core_type = #tpu.core_type<tc>, window_params = [{transform_indices = @transform_0, window_bounds = array<i64: 8, 32>}, {pipeline_mode = #tpu.pipeline_mode<synchronous>, transform_indices = @transform_1, window_bounds = array<i64: 32, 64>}, {pipeline_mode = #tpu.pipeline_mode<synchronous>, transform_indices = @transform_2, window_bounds = array<i64: 1, 64>}, {pipeline_mode = #tpu.pipeline_mode<synchronous>, transform_indices = @transform_3, window_bounds = array<i64: 64, 256>}, {pipeline_mode = #tpu.pipeline_mode<synchronous>, transform_indices = @transform_4, window_bounds = array<i64: 1, 256>}, {pipeline_mode = #tpu.pipeline_mode<synchronous>, transform_indices = @transform_5, window_bounds = array<i64: 256, 8>}, {pipeline_mode = #tpu.pipeline_mode<synchronous>, transform_indices = @transform_6, window_bounds = array<i64: 1, 8>}, {transform_indices = @transform_7, window_bounds = array<i64: 8, 8>}]} {
    %c0 = arith.constant 0 : index
    %c0_0 = arith.constant 0 : index
    %0 = vector.load %arg1[%c0, %c0_0] : memref<8x32xf32, #tpu.memory_space<vmem>>, vector<8x32xf32>
    %1 = arith.truncf %0 : vector<8x32xf32> to vector<8x32xbf16>
    %c0_1 = arith.constant 0 : index
    %c0_2 = arith.constant 0 : index
    %2 = vector.load %arg2[%c0_1, %c0_2] : memref<32x64xbf16, #tpu.memory_space<vmem>>, vector<32x64xbf16>
    %cst = arith.constant dense<0.000000e+00> : vector<8x64xf32>
    %3 = tpu.matmul %1, %2, %cst {dimension_numbers = #tpu.dot_dimension_numbers<[1], [0], [0], [1], [0, 0, 1, 1], [], []>} : vector<8x32xbf16>, vector<32x64xbf16>, vector<8x64xf32> -> vector<8x64xf32>
    %c0_3 = arith.constant 0 : index
    %c0_4 = arith.constant 0 : index
    %4 = vector.load %arg3[%c0_3, %c0_4] : memref<1x64xf32, #tpu.memory_space<vmem>>, vector<1x64xf32>
    %5 = vector.broadcast %4 : vector<1x64xf32> to vector<8x64xf32>
    %6 = arith.addf %3, %5 : vector<8x64xf32>
    %cst_5 = arith.constant 0.000000e+00 : f32
    %7 = vector.broadcast %cst_5 : f32 to vector<8x64xf32>
    %8 = arith.maximumf %6, %7 : vector<8x64xf32>
    %9 = arith.truncf %8 : vector<8x64xf32> to vector<8x64xbf16>
    %c0_6 = arith.constant 0 : index
    %c0_7 = arith.constant 0 : index
    %10 = vector.load %arg4[%c0_6, %c0_7] : memref<64x256xbf16, #tpu.memory_space<vmem>>, vector<64x256xbf16>
    %cst_8 = arith.constant dense<0.000000e+00> : vector<8x256xf32>
    %11 = tpu.matmul %9, %10, %cst_8 {dimension_numbers = #tpu.dot_dimension_numbers<[1], [0], [0], [1], [0, 0, 1, 1], [], []>} : vector<8x64xbf16>, vector<64x256xbf16>, vector<8x256xf32> -> vector<8x256xf32>
    %c0_9 = arith.constant 0 : index
    %c0_10 = arith.constant 0 : index
    %12 = vector.load %arg5[%c0_9, %c0_10] : memref<1x256xf32, #tpu.memory_space<vmem>>, vector<1x256xf32>
    %13 = vector.broadcast %12 : vector<1x256xf32> to vector<8x256xf32>
    %14 = arith.addf %11, %13 : vector<8x256xf32>
    %cst_11 = arith.constant 0.000000e+00 : f32
    %15 = vector.broadcast %cst_11 : f32 to vector<8x256xf32>
    %16 = arith.maximumf %14, %15 : vector<8x256xf32>
    %17 = arith.truncf %16 : vector<8x256xf32> to vector<8x256xbf16>
    %c0_12 = arith.constant 0 : index
    %c0_13 = arith.constant 0 : index
    %18 = vector.load %arg6[%c0_12, %c0_13] : memref<256x8xbf16, #tpu.memory_space<vmem>>, vector<256x8xbf16>
    %cst_14 = arith.constant dense<0.000000e+00> : vector<8x8xf32>
    %19 = tpu.matmul %17, %18, %cst_14 {dimension_numbers = #tpu.dot_dimension_numbers<[1], [0], [0], [1], [0, 0, 1, 1], [], []>} : vector<8x256xbf16>, vector<256x8xbf16>, vector<8x8xf32> -> vector<8x8xf32>
    %c0_15 = arith.constant 0 : index
    %c0_16 = arith.constant 0 : index
    %20 = vector.load %arg7[%c0_15, %c0_16] : memref<1x8xf32, #tpu.memory_space<vmem>>, vector<1x8xf32>
    %21 = vector.broadcast %20 : vector<1x8xf32> to vector<8x8xf32>
    %22 = arith.addf %19, %21 : vector<8x8xf32>
    %c0_17 = arith.constant 0 : index
    %c0_18 = arith.constant 0 : index
    %23 = vector.load %arg8[%c0_17, %c0_18] : memref<8x8xf32, #tpu.memory_space<vmem>>, vector<8x8xf32>
    tpu.vector_store %arg8[%c0_17, %c0_18], %22 {strides = array<i32>} : memref<8x8xf32, #tpu.memory_space<vmem>>, vector<8x8xf32>,
    return
  }
  func.func @transform_0(%arg0: i32) -> (i32, i32) {
    %c0_i32 = arith.constant 0 : i32
    %c0_i32_0 = arith.constant 0 : i32
    return %arg0, %c0_i32 : i32, i32
  }
  func.func @transform_1(%arg0: i32) -> (i32, i32) {
    %c0_i32 = arith.constant 0 : i32
    %c0_i32_0 = arith.constant 0 : i32
    %c0_i32_1 = arith.constant 0 : i32
    return %c0_i32, %c0_i32_0 : i32, i32
  }
  func.func @transform_2(%arg0: i32) -> (i32, i32) {
    %c0_i32 = arith.constant 0 : i32
    %c0_i32_0 = arith.constant 0 : i32
    %c0_i32_1 = arith.constant 0 : i32
    return %c0_i32, %c0_i32_0 : i32, i32
  }
  func.func @transform_3(%arg0: i32) -> (i32, i32) {
    %c0_i32 = arith.constant 0 : i32
    %c0_i32_0 = arith.constant 0 : i32
    %c0_i32_1 = arith.constant 0 : i32
    return %c0_i32, %c0_i32_0 : i32, i32
  }
  func.func @transform_4(%arg0: i32) -> (i32, i32) {
    %c0_i32 = arith.constant 0 : i32
    %c0_i32_0 = arith.constant 0 : i32
    %c0_i32_1 = arith.constant 0 : i32
    return %c0_i32, %c0_i32_0 : i32, i32
  }
  func.func @transform_5(%arg0: i32) -> (i32, i32) {
    %c0_i32 = arith.constant 0 : i32
    %c0_i32_0 = arith.constant 0 : i32
    %c0_i32_1 = arith.constant 0 : i32
    return %c0_i32, %c0_i32_0 : i32, i32
  }
  func.func @transform_6(%arg0: i32) -> (i32, i32) {
    %c0_i32 = arith.constant 0 : i32
    %c0_i32_0 = arith.constant 0 : i32
    %c0_i32_1 = arith.constant 0 : i32
    return %c0_i32, %c0_i32_0 : i32, i32
  }
  func.func @transform_7(%arg0: i32) -> (i32, i32) {
    %c0_i32 = arith.constant 0 : i32
    %c0_i32_0 = arith.constant 0 : i32
    return %arg0, %c0_i32 : i32, i32
  }
}

</mosaic_0001>

<llo_original>
// kernel: tpu_custom_call.1
$region0: #{tpu_custom_call.1}
  #allocation0 [shape = 'u32[]', space=smem, size = 0x4, offset = 0x4, fixed_abs, tag = 'smem constant byte address 0x4 - core index']
  #allocation1 [shape = 'u32[144,128]{1,0:T(1,128)}', space=vmem, size = 0x12000, scoped, tag = 'internal scratch']
  %s0 = inlined_call_operand.vmem [shape: f32[8,32], index: 0, kind: input, shape index: {}]
  %s1 = inlined_call_operand.vmem [shape: bf16[32,64], index: 1, kind: input, shape index: {}]
  %s2 = inlined_call_operand.vmem [shape: f32[1,64], index: 2, kind: input, shape index: {}]
  %s3 = inlined_call_operand.vmem [shape: bf16[64,256], index: 3, kind: input, shape index: {}]
  %s4 = inlined_call_operand.vmem [shape: f32[1,256], index: 4, kind: input, shape index: {}]
  %s5 = inlined_call_operand.vmem [shape: bf16[256,8], index: 5, kind: input, shape index: {}]
  %s6 = inlined_call_operand.vmem [shape: f32[1,8], index: 6, kind: input, shape index: {}]
  %s7 = inlined_call_operand.hbm [shape: f32[8,8], index: 7, kind: output, shape index: {}]
  %s8 = sld [smem:[#allocation0]]
  $region38: #{tpu_custom_call.1} parent=0
    _
  %s10 = ssub.s32 1, %s8
  %s11 = scalar_select 0, %s10, %s8
  $region1: #{tpu_custom_call.1} parent=0
    #allocation2 [shape = 'u8[4096]{0}', space=vmem, size = 0x1000, scoped, tag = 'output window, operand 0, single buffered']
    #allocation3 [shape = 's32[1]{0}', space=sflag, size = 0x4, scoped, tag = 'scoped memory for tpu_custom_call.1']
    %12 = vsyncpa [#allocation3], 0
    // Predicated region
    $region2: #{tpu_custom_call.1} parent=1 // pred_check
      _
    $region3: #{tpu_custom_call.1} parent=1 // pred_check_branch
      %14 = sbr.rel (0) target = $region5
    $region4: #{tpu_custom_call.1} parent=1 // pred_region
      _
    $region5: #{tpu_custom_call.1} parent=1 // pred_fallthru
      _
    // Predicated region
    $region6: #{tpu_custom_call.1} parent=1 // pred_check
      _
    $region7: #{tpu_custom_call.1} parent=1 // pred_check_branch
      %16 = sbr.rel (0) target = $region9
    $region8: #{tpu_custom_call.1} parent=1 // pred_region
      _
    $region9: #{tpu_custom_call.1} parent=1 // pred_fallthru
      _
    // Predicated region
    $region10: #{tpu_custom_call.1} parent=1 // pred_check
      _
    $region11: #{tpu_custom_call.1} parent=1 // pred_check_branch
      %18 = sbr.rel (0) target = $region13
    $region12: #{tpu_custom_call.1} parent=1 // pred_region
      _
    $region13: #{tpu_custom_call.1} parent=1 // pred_fallthru
      _
    // Predicated region
    $region14: #{tpu_custom_call.1} parent=1 // pred_check
      _
    $region15: #{tpu_custom_call.1} parent=1 // pred_check_branch
      %20 = sbr.rel (0) target = $region17
    $region16: #{tpu_custom_call.1} parent=1 // pred_region
      _
    $region17: #{tpu_custom_call.1} parent=1 // pred_fallthru
      _
    // Predicated region
    $region18: #{tpu_custom_call.1} parent=1 // pred_check
      _
    $region19: #{tpu_custom_call.1} parent=1 // pred_check_branch
      %22 = sbr.rel (0) target = $region21
    $region20: #{tpu_custom_call.1} parent=1 // pred_region
      _
    $region21: #{tpu_custom_call.1} parent=1 // pred_fallthru
      _
    // Predicated region
    $region22: #{tpu_custom_call.1} parent=1 // pred_check
      _
    $region23: #{tpu_custom_call.1} parent=1 // pred_check_branch
      %24 = sbr.rel (0) target = $region25
    $region24: #{tpu_custom_call.1} parent=1 // pred_region
      _
    $region25: #{tpu_custom_call.1} parent=1 // pred_fallthru
      _
    // Predicated region
    $region26: #{tpu_custom_call.1} parent=1 // pred_check
      _
    $region27: #{tpu_custom_call.1} parent=1 // pred_check_branch
      %26 = sbr.rel (0) target = $region29
    $region28: #{tpu_custom_call.1} parent=1 // pred_region
      _
    $region29: #{tpu_custom_call.1} parent=1 // pred_fallthru
      _
    %v28 = vld [vmem:[%s0] sm:$0xff]
    %v29 = vpack.c.bf16 %v28, %v28
    %v30 = vld [vmem:[%s1] sm:$0xf]
    %v31 = vld [vmem:[%s1 + $0x4] sm:$0xf]
    %v32 = vld [vmem:[%s1 + $0x8] sm:$0xf]
    %v33 = vld [vmem:[%s1 + $0xc] sm:$0xf]
    %v34 = vld [vmem:[%s2] sm:$0x1]
    %v36 = vlaneseq
    %v37 = vshrl.u32 %v36, 7
    %v38 = vsub.s32 0, %v37
    %v39 = vrot.slane %v34, %v38
    %v45 = vunpack.c.l.b16 %v30
    %v46 = vunpack.c.l.b16 %v31
    %v47 = vunpack.c.l.b16 %v32
    %v48 = vunpack.c.l.b16 %v33
    %v49 = vpack.c.b16 %v46, %v45
    %v50 = vpack.c.b16 %v48, %v47
    %vm53 = vcmask 261120
    %v55 = vsel %vm53, %v29, 0
    %57 = vmatprep.subr.bf16.mxu0 0
    %58 = vmatpush1.bf16.msra.mxu0 0
    %59 = vmatprep.subr.bf16.mxu0 0
    %60 = vmatpush1.bf16.msra.mxu0 0
    %61 = vmatprep.subr.bf16.mxu0 0
    %62 = vmatpush1.bf16.msra.mxu0 0
    %63 = vmatprep.subr.bf16.mxu0 0
    %64 = vmatpush1.bf16.msra.mxu0 0
    %65 = vmatprep.subr.bf16.mxu0 0
    %66 = vmatpush1.bf16.msra.mxu0 0
    %67 = vmatprep.subr.bf16.mxu0 0
    %68 = vmatpush1.bf16.msra.mxu0 0
    %69 = vmatprep.subr.bf16.mxu0 0
    %70 = vmatpush1.bf16.msra.mxu0 %v50
    %71 = vmatprep.subr.bf16.mxu0 0
    %72 = vmatpush1.bf16.msra.mxu0 %v49
    %73 = vmatprep.subr.bf16.mxu0 0
    %74 = vmatpush2.bf16.msra.mxu0 0
    %75 = vmatprep.subr.bf16.mxu0 0
    %76 = vmatpush2.bf16.msra.mxu0 0
    %77 = vmatprep.subr.bf16.mxu0 0
    %78 = vmatpush2.bf16.msra.mxu0 0
    %79 = vmatprep.subr.bf16.mxu0 0
    %80 = vmatpush2.bf16.msra.mxu0 0
    %81 = vmatprep.subr.bf16.mxu0 0
    %82 = vmatpush2.bf16.msra.mxu0 0
    %83 = vmatprep.subr.bf16.mxu0 0
    %84 = vmatpush2.bf16.msra.mxu0 0
    %85 = vmatprep.subr.bf16.mxu0 0
    %86 = vmatpush2.bf16.msra.mxu0 0
    %87 = vmatprep.subr.bf16.mxu0 0
    %88 = vmatpush2.bf16.msra.mxu0 0
    %89 = vmatprep.mubr.bf16.mxu0 0
    %90 = vmatmul.mubr.bf16.gmra.mxu0 %v55
    %v91 = vpop.f32.mrf.mxu0
    %v92 = vadd.f32 %v39, %v91
    %v93 = vpop.f32.mrf.mxu0
    %v94 = vpop.f32.mrf.mxu0
    %v95 = vpop.f32.mrf.mxu0
    %96 = vdwg.mxu0
    %v97 = vmax.f32 %v92, 0.0
    %v98 = vpack.c.bf16 %v97, %v97
    %v99 = vld [vmem:[%s3] sm:$0xff]
    %v100 = vld [vmem:[%s3 + $0x8] sm:$0xff]
    %v101 = vld [vmem:[%s3 + $0x10] sm:$0xff]
    %v102 = vld [vmem:[%s3 + $0x18] sm:$0xff]
    %v103 = vld [vmem:[%s3 + $0x20] sm:$0xff]
    %v104 = vld [vmem:[%s3 + $0x28] sm:$0xff]
    %v105 = vld [vmem:[%s3 + $0x30] sm:$0xff]
    %v106 = vld [vmem:[%s3 + $0x38] sm:$0xff]
    %v107 = vld [vmem:[%s4] sm:$0x3]
    %v109 = vlaneseq
    %v110 = vshrl.u32 %v109, 7
    %v111 = vsub.s32 0, %v110
    %v112 = vrot.slane %v107, %v111
    %v113 = vlaneseq
    %v114 = vshrl.u32 %v113, 7
    %v115 = vsub.s32 1, %v114
    %v116 = vrot.slane %v107, %v115
    %v127 = vunpack.c.l.b16 %v99
    %v128 = vunpack.c.h.b16 %v99
    %v129 = vunpack.c.l.b16 %v100
    %v130 = vunpack.c.h.b16 %v100
    %v131 = vunpack.c.l.b16 %v101
    %v132 = vunpack.c.h.b16 %v101
    %v133 = vunpack.c.l.b16 %v102
    %v134 = vunpack.c.h.b16 %v102
    %v135 = vunpack.c.l.b16 %v103
    %v136 = vunpack.c.h.b16 %v103
    %v137 = vunpack.c.l.b16 %v104
    %v138 = vunpack.c.h.b16 %v104
    %v139 = vunpack.c.l.b16 %v105
    %v140 = vunpack.c.h.b16 %v105
    %v141 = vunpack.c.l.b16 %v106
    %v142 = vunpack.c.h.b16 %v106
    %v143 = vpack.c.b16 %v129, %v127
    %v144 = vpack.c.b16 %v130, %v128
    %v145 = vpack.c.b16 %v133, %v131
    %v146 = vpack.c.b16 %v134, %v132
    %v147 = vpack.c.b16 %v137, %v135
    %v148 = vpack.c.b16 %v138, %v136
    %v149 = vpack.c.b16 %v141, %v139
    %v150 = vpack.c.b16 %v142, %v140
    %vm159 = vcmask 523264
    %v161 = vsel %vm159, %v98, 0
    %163 = vmatprep.subr.bf16.mxu0 0
    %164 = vmatpush1.bf16.msra.mxu0 0
    %165 = vmatprep.subr.bf16.mxu0 0
    %166 = vmatpush1.bf16.msra.mxu0 0
    %167 = vmatprep.subr.bf16.mxu0 0
    %168 = vmatpush1.bf16.msra.mxu0 0
    %169 = vmatprep.subr.bf16.mxu0 0
    %170 = vmatpush1.bf16.msra.mxu0 0
    %171 = vmatprep.subr.bf16.mxu0 %v150
    %172 = vmatpush1.bf16.msra.mxu0 %v149
    %173 = vmatprep.subr.bf16.mxu0 %v148
    %174 = vmatpush1.bf16.msra.mxu0 %v147
    %175 = vmatprep.subr.bf16.mxu0 %v146
    %176 = vmatpush1.bf16.msra.mxu0 %v145
    %177 = vmatprep.subr.bf16.mxu0 %v144
    %178 = vmatpush1.bf16.msra.mxu0 %v143
    %179 = vmatprep.subr.bf16.mxu0 0
    %180 = vmatpush2.bf16.msra.mxu0 0
    %181 = vmatprep.subr.bf16.mxu0 0
    %182 = vmatpush2.bf16.msra.mxu0 0
    %183 = vmatprep.subr.bf16.mxu0 0
    %184 = vmatpush2.bf16.msra.mxu0 0
    %185 = vmatprep.subr.bf16.mxu0 0
    %186 = vmatpush2.bf16.msra.mxu0 0
    %187 = vmatprep.subr.bf16.mxu0 0
    %188 = vmatpush2.bf16.msra.mxu0 0
    %189 = vmatprep.subr.bf16.mxu0 0
    %190 = vmatpush2.bf16.msra.mxu0 0
    %191 = vmatprep.subr.bf16.mxu0 0
    %192 = vmatpush2.bf16.msra.mxu0 0
    %193 = vmatprep.subr.bf16.mxu0 0
    %194 = vmatpush2.bf16.msra.mxu0 0
    %195 = vmatprep.mubr.bf16.mxu0 0
    %196 = vmatmul.mubr.bf16.gmra.mxu0 %v161
    %v197 = vpop.f32.mrf.mxu0
    %v198 = vadd.f32 %v112, %v197
    %v199 = vpop.f32.mrf.mxu0
    %v200 = vadd.f32 %v116, %v199
    %v201 = vpop.f32.mrf.mxu0
    %v202 = vpop.f32.mrf.mxu0
    %203 = vdwg.mxu0
    %v204 = vmax.f32 %v198, 0.0
    %v205 = vmax.f32 %v200, 0.0
    %v206 = vpack.c.bf16 %v204, %v204
    %v207 = vpack.c.bf16 %v205, %v205
    %v208 = vld [vmem:[%s5] sm:$0xf]
    %v209 = vld [vmem:[%s5 + $0x4] sm:$0xf]
    %v210 = vld [vmem:[%s5 + $0x8] sm:$0xf]
    %v211 = vld [vmem:[%s5 + $0xc] sm:$0xf]
    %v212 = vld [vmem:[%s5 + $0x10] sm:$0xf]
    %v213 = vld [vmem:[%s5 + $0x14] sm:$0xf]
    %v214 = vld [vmem:[%s5 + $0x18] sm:$0xf]
    %v215 = vld [vmem:[%s5 + $0x1c] sm:$0xf]
    %v216 = vld [vmem:[%s5 + $0x20] sm:$0xf]
    %v217 = vld [vmem:[%s5 + $0x24] sm:$0xf]
    %v218 = vld [vmem:[%s5 + $0x28] sm:$0xf]
    %v219 = vld [vmem:[%s5 + $0x2c] sm:$0xf]
    %v220 = vld [vmem:[%s5 + $0x30] sm:$0xf]
    %v221 = vld [vmem:[%s5 + $0x34] sm:$0xf]
    %v222 = vld [vmem:[%s5 + $0x38] sm:$0xf]
    %v223 = vld [vmem:[%s5 + $0x3c] sm:$0xf]
    %v224 = vld [vmem:[%s5 + $0x40] sm:$0xf]
    %v225 = vld [vmem:[%s5 + $0x44] sm:$0xf]
    %v226 = vld [vmem:[%s5 + $0x48] sm:$0xf]
    %v227 = vld [vmem:[%s5 + $0x4c] sm:$0xf]
    %v228 = vld [vmem:[%s5 + $0x50] sm:$0xf]
    %v229 = vld [vmem:[%s5 + $0x54] sm:$0xf]
    %v230 = vld [vmem:[%s5 + $0x58] sm:$0xf]
    %v231 = vld [vmem:[%s5 + $0x5c] sm:$0xf]
    %v232 = vld [vmem:[%s5 + $0x60] sm:$0xf]
    %v233 = vld [vmem:[%s5 + $0x64] sm:$0xf]
    %v234 = vld [vmem:[%s5 + $0x68] sm:$0xf]
    %v235 = vld [vmem:[%s5 + $0x6c] sm:$0xf]
    %v236 = vld [vmem:[%s5 + $0x70] sm:$0xf]
    %v237 = vld [vmem:[%s5 + $0x74] sm:$0xf]
    %v238 = vld [vmem:[%s5 + $0x78] sm:$0xf]
    %v239 = vld [vmem:[%s5 + $0x7c] sm:$0xf]
    %v240 = vld [vmem:[%s6] sm:$0x1]
    %v242 = vlaneseq
    %v243 = vshrl.u32 %v242, 7
    %v244 = vsub.s32 0, %v243
    %v245 = vrot.slane %v240, %v244
    %v279 = vunpack.c.l.b16 %v208
    %v280 = vunpack.c.l.b16 %v209
    %v281 = vunpack.c.l.b16 %v210
    %v282 = vunpack.c.l.b16 %v211
    %v283 = vunpack.c.l.b16 %v212
    %v284 = vunpack.c.l.b16 %v213
    %v285 = vunpack.c.l.b16 %v214
    %v286 = vunpack.c.l.b16 %v215
    %v287 = vunpack.c.l.b16 %v216
    %v288 = vunpack.c.l.b16 %v217
    %v289 = vunpack.c.l.b16 %v218
    %v290 = vunpack.c.l.b16 %v219
    %v291 = vunpack.c.l.b16 %v220
    %v292 = vunpack.c.l.b16 %v221
    %v293 = vunpack.c.l.b16 %v222
    %v294 = vunpack.c.l.b16 %v223
    %v295 = vunpack.c.l.b16 %v224
    %v296 = vunpack.c.l.b16 %v225
    %v297 = vunpack.c.l.b16 %v226
    %v298 = vunpack.c.l.b16 %v227
    %v299 = vunpack.c.l.b16 %v228
    %v300 = vunpack.c.l.b16 %v229
    %v301 = vunpack.c.l.b16 %v230
    %v302 = vunpack.c.l.b16 %v231
    %v303 = vunpack.c.l.b16 %v232
    %v304 = vunpack.c.l.b16 %v233
    %v305 = vunpack.c.l.b16 %v234
    %v306 = vunpack.c.l.b16 %v235
    %v307 = vunpack.c.l.b16 %v236
    %v308 = vunpack.c.l.b16 %v237
    %v309 = vunpack.c.l.b16 %v238
    %v310 = vunpack.c.l.b16 %v239
    %v311 = vpack.c.b16 %v280, %v279
    %v312 = vpack.c.b16 %v282, %v281
    %v313 = vpack.c.b16 %v284, %v283
    %v314 = vpack.c.b16 %v286, %v285
    %v315 = vpack.c.b16 %v288, %v287
    %v316 = vpack.c.b16 %v290, %v289
    %v317 = vpack.c.b16 %v292, %v291
    %v318 = vpack.c.b16 %v294, %v293
    %v319 = vpack.c.b16 %v296, %v295
    %v320 = vpack.c.b16 %v298, %v297
    %v321 = vpack.c.b16 %v300, %v299
    %v322 = vpack.c.b16 %v302, %v301
    %v323 = vpack.c.b16 %v304, %v303
    %v324 = vpack.c.b16 %v306, %v305
    %v325 = vpack.c.b16 %v308, %v307
    %v326 = vpack.c.b16 %v310, %v309
    %343 = vmatprep.subr.bf16.mxu0 0
    %344 = vmatpush1.bf16.msra.mxu0 %v318
    %345 = vmatprep.subr.bf16.mxu0 0
    %346 = vmatpush1.bf16.msra.mxu0 %v317
    %347 = vmatprep.subr.bf16.mxu0 0
    %348 = vmatpush1.bf16.msra.mxu0 %v316
    %349 = vmatprep.subr.bf16.mxu0 0
    %350 = vmatpush1.bf16.msra.mxu0 %v315
    %351 = vmatprep.subr.bf16.mxu0 0
    %352 = vmatpush1.bf16.msra.mxu0 %v314
    %353 = vmatprep.subr.bf16.mxu0 0
    %354 = vmatpush1.bf16.msra.mxu0 %v313
    %355 = vmatprep.subr.bf16.mxu0 0
    %356 = vmatpush1.bf16.msra.mxu0 %v312
    %357 = vmatprep.subr.bf16.mxu0 0
    %358 = vmatpush1.bf16.msra.mxu0 %v311
    %359 = vmatprep.subr.bf16.mxu0 0
    %360 = vmatpush2.bf16.msra.mxu0 %v326
    %361 = vmatprep.subr.bf16.mxu0 0
    %362 = vmatpush2.bf16.msra.mxu0 %v325
    %363 = vmatprep.subr.bf16.mxu0 0
    %364 = vmatpush2.bf16.msra.mxu0 %v324
    %365 = vmatprep.subr.bf16.mxu0 0
    %366 = vmatpush2.bf16.msra.mxu0 %v323
    %367 = vmatprep.subr.bf16.mxu0 0
    %368 = vmatpush2.bf16.msra.mxu0 %v322
    %369 = vmatprep.subr.bf16.mxu0 0
    %370 = vmatpush2.bf16.msra.mxu0 %v321
    %371 = vmatprep.subr.bf16.mxu0 0
    %372 = vmatpush2.bf16.msra.mxu0 %v320
    %373 = vmatprep.subr.bf16.mxu0 0
    %374 = vmatpush2.bf16.msra.mxu0 %v319
    %375 = vmatprep.mubr.bf16.mxu0 %v207
    %376 = vmatmul.mubr.bf16.gmra.mxu0 %v206
    %v377 = vpop.f32.mrf.mxu0
    %v378 = vadd.f32 %v245, %v377
    %v379 = vpop.f32.mrf.mxu0
    %v380 = vpop.f32.mrf.mxu0
    %v381 = vpop.f32.mrf.mxu0
    %382 = vdwg.mxu0
    %vm383 = vcmask 64512
    %384 = vst.msk [vmem:[#allocation2] sm:$0xff] %vm383, %v378
    // Predicated region
    $region30: #{tpu_custom_call.1} parent=1 // pred_check
      _
    $region31: #{tpu_custom_call.1} parent=1 // pred_check_branch
      %386 = sbr.rel (0) target = $region33
    $region32: #{tpu_custom_call.1} parent=1 // pred_region
      %s388 = ssub.s32 128, 128
      %389 = vsyncadd [#allocation3], %s388
      %s391 = sshll.u32 [#allocation2], 4
      %s392 = int_to_ptr.vmem [resolvable:$true] %s391
      %394 = dma.vmem_to_hbm [thread:$0]  %s392, 128, %s7, [#allocation3]
    $region33: #{tpu_custom_call.1} parent=1 // pred_fallthru
      _
    // Predicated region
    $region34: #{tpu_custom_call.1} parent=1 // pred_check
      _
    $region35: #{tpu_custom_call.1} parent=1 // pred_check_branch
      %396 = sbr.rel (0) target = $region37
    $region36: #{tpu_custom_call.1} parent=1 // pred_region
      %397 = dma.done [#allocation3], 128
    $region37: #{tpu_custom_call.1} parent=1 // pred_fallthru
      _
    %398 = vsyncpa [#allocation3], 1

</llo_original>
